<compile_context>
chip_gen: v6e
topology: v6e:2x2x1
jax: 0.10.0
libtpu: 0.0.40
codegen_flags: <defaults>
</compile_context>

<pallas_src>
import jax
import jax.numpy as jnp
from jax import lax
from jax.experimental import pallas as pl
from jax.experimental.pallas import tpu as pltpu


# ----------------------------------------------------------------------------- fc
def _fc_twice_sigmoid(pooled, w1, b1, w2, b2, out_dtype):
    """sigmoid(fc(pooled) + fc(pooled)) with fc = Lin(1,h)-ReLU-Lin(h,o)-ReLU."""
    hidden, out_dim = w2.shape
    # Linear(1, hidden) + ReLU: contraction dim is 1 -> pure broadcast MAC (VPU).
    h1 = jnp.maximum(pooled * w1 + b1, 0.0)                       # (TM, hidden)
    if hidden <= 8:
        # Tiny hidden: static-unrolled broadcast multiply-accumulate on the VPU.
        acc = jnp.zeros((pooled.shape[0], out_dim), jnp.float32)
        for k in range(hidden):
            acc = acc + h1[:, k:k + 1] * w2[k:k + 1, :]
    else:
        # Larger hidden: run the contraction on the (otherwise idle) MXU in bf16.
        acc = jnp.dot(h1.astype(jnp.bfloat16), w2.astype(jnp.bfloat16),
                      preferred_element_type=jnp.float32)
    fc_out = jnp.maximum(acc + b2, 0.0)            # trailing ReLU (it IS in the Sequential)
    # avg branch == max branch (both pools are AdaptiveAvgPool2d) -> sum == 2 * fc.
    return jax.nn.sigmoid(2.0 * fc_out).astype(out_dtype)


# ------------------------------------------------------------------------ kernels
def _make_single_chunk_kernel(hw):
    """Whole spatial extent in one block: pool + fc + sigmoid in a single step."""
    inv_hw = 1.0 / float(hw)

    def kernel(x_ref, w1_ref, b1_ref, w2_ref, b2_ref, o_ref):
        # Native-dtype tile on the wire; f32 widening is fused into the lane reduce.
        sums = jnp.sum(x_ref[...], axis=-1, keepdims=True, dtype=jnp.float32)
        o_ref[...] = _fc_twice_sigmoid(sums * inv_hw, w1_ref[...], b1_ref[...],
                                       w2_ref[...], b2_ref[...], o_ref.dtype)

    return kernel


def _make_multi_chunk_kernel(hw, thw):
    """Huge H*W: accumulate per-row partial sums across an 'arbitrary' spatial axis."""
    inv_hw = 1.0 / float(hw)
    ragged = (hw % thw) != 0

    def kernel(x_ref, w1_ref, b1_ref, w2_ref, b2_ref, o_ref, acc_ref):
        s = pl.program_id(1)

        @pl.when(s == 0)
        def _init():
            acc_ref[...] = jnp.zeros_like(acc_ref)

        x = x_ref[...]
        if ragged:
            # Zero the (statically known) ragged tail — out-of-bounds block regions
            # are undefined, and they must not contaminate the row sums.
            col = s * thw + lax.broadcasted_iota(jnp.int32, x.shape, 1)
            x = jnp.where(col < hw, x, 0)
        acc_ref[...] += jnp.sum(x, axis=-1, keepdims=True, dtype=jnp.float32)

        @pl.when(s == pl.num_programs(1) - 1)
        def _finalize():
            o_ref[...] = _fc_twice_sigmoid(acc_ref[...] * inv_hw, w1_ref[...],
                                           b1_ref[...], w2_ref[...], b2_ref[...],
                                           o_ref.dtype)

    return kernel


# ------------------------------------------------------------------------ wrapper
def _vmem_capacity_bytes():
    try:
        cap = getattr(pltpu.get_tpu_info(), "vmem_capacity_bytes", None)
        if cap:
            return int(cap)
    except Exception:
        pass
    return 64 * 1024 * 1024          # conservative (v7x-sized) fallback


def channel_attention(x, w1, b1, w2, b2, *, row_tile=None, spatial_tile=None):
    """ChannelAttention forward.  x: (B, C, H, W) -> (B, C, 1, output_dim)."""
    B, C, H, W = x.shape
    rows, hw = B * C, H * W
    hidden, out_dim = w2.shape

    x2 = x.reshape(rows, hw)                          # free reshape, native dtype
    in_item = jnp.dtype(x2.dtype).itemsize
    out_dtype = x2.dtype
    out_item = jnp.dtype(out_dtype).itemsize
    out_lanes = ((out_dim + 127) // 128) * 128        # lane-padded output row footprint

    # Generation-aware budget: ~3/16 of physical VMEM per streamed (double-buffered)
    # buffer set -> ~24 MiB on v5e/v6e (128 MiB VMEM), ~12 MiB on v7x (64 MiB).
    vmem_cap = _vmem_capacity_bytes()
    per_buf = (vmem_cap * 3) // 16
    row_bytes = hw * in_item + out_lanes * out_item   # input + padded-output per row
    min_rows = min(8, rows)

    # --- spatial (lane) tiling ------------------------------------------------
    if spatial_tile is not None:
        thw = max(1, min(int(spatial_tile), hw))
    elif min_rows * row_bytes <= per_buf:
        thw = hw                                      # whole row fits: one spatial chunk
    else:
        thw = per_buf // (min_rows * in_item)         # chunk huge rows (v7x-safe)
    if thw < hw:
        thw = max(128, (thw // 128) * 128)            # chunked lane dim must be 128-aligned
        thw = min(thw, hw)
    multi = thw < hw
    n_spatial = pl.cdiv(hw, thw)

    # --- row (sublane) tiling: no artificial cap, big tiles amortize the ~0.35 us
    # per-step overhead; budget already accounts for the lane-padded output block.
    if row_tile is not None:
        tm = max(1, min(int(row_tile), rows))
    elif multi:
        tm = min_rows
    else:
        tm = max(min_rows, per_buf // row_bytes)
    tm = min(tm, rows)
    if tm < rows:
        tm = max(8, (tm // 8) * 8)                    # sublane dim: %8, or full extent
        if tm > rows:
            tm = rows
    n_rows = pl.cdiv(rows, tm)

    # fc parameters in f32: tiny, constant-index BlockSpecs keep them VMEM-resident.
    w1f = w1.reshape(1, hidden).astype(jnp.float32)
    b1f = b1.reshape(1, hidden).astype(jnp.float32)
    w2f = w2.astype(jnp.float32)
    b2f = b2.reshape(1, out_dim).astype(jnp.float32)

    # VMEM limit from actual usage (+30% headroom), never the full physical VMEM.
    in_buf = tm * thw * in_item
    out_buf = tm * out_lanes * out_item
    acc_buf = tm * 128 * 4 if multi else 0
    params_buf = 4 * 8 * 128 * 4
    usage = 2 * (in_buf + out_buf) + acc_buf + params_buf
    vmem_limit = min(int(usage * 1.3) + 8 * 1024 * 1024, (vmem_cap * 3) // 4)
    vmem_limit = max(vmem_limit, 16 * 1024 * 1024)

    if multi:
        kernel = _make_multi_chunk_kernel(hw, thw)
        grid = (n_rows, n_spatial)
        in_specs = [
            pl.BlockSpec((tm, thw), lambda i, s: (i, s)),
            pl.BlockSpec((1, hidden), lambda i, s: (0, 0)),
            pl.BlockSpec((1, hidden), lambda i, s: (0, 0)),
            pl.BlockSpec((hidden, out_dim), lambda i, s: (0, 0)),
            pl.BlockSpec((1, out_dim), lambda i, s: (0, 0)),
        ]
        out_specs = pl.BlockSpec((tm, out_dim), lambda i, s: (i, 0))
        scratch_shapes = [pltpu.VMEM((tm, 1), jnp.float32)]
        dim_sem = ("parallel", "arbitrary")
    else:
        kernel = _make_single_chunk_kernel(hw)
        grid = (n_rows,)
        in_specs = [
            pl.BlockSpec((tm, hw), lambda i: (i, 0)),
            pl.BlockSpec((1, hidden), lambda i: (0, 0)),
            pl.BlockSpec((1, hidden), lambda i: (0, 0)),
            pl.BlockSpec((hidden, out_dim), lambda i: (0, 0)),
            pl.BlockSpec((1, out_dim), lambda i: (0, 0)),
        ]
        out_specs = pl.BlockSpec((tm, out_dim), lambda i: (i, 0))
        scratch_shapes = []
        dim_sem = ("parallel",)

    # TODO(synk): verify in xprof that the leading "parallel" row axis really shards
    # across both v7x TensorCores; if not, switch to pltpu.CORE_PARALLEL/pl.core_map
    # with an explicit size-2 core axis over the rows.
    out = pl.pallas_call(
        kernel,
        out_shape=jax.ShapeDtypeStruct((rows, out_dim), out_dtype),
        grid=grid,
        in_specs=in_specs,
        out_specs=out_specs,
        scratch_shapes=scratch_shapes,
        compiler_params=pltpu.CompilerParams(
            dimension_semantics=dim_sem,
            vmem_limit_bytes=int(vmem_limit),
        ),
    )(x2, w1f, b1f, w2f, b2f)

    return out.reshape(B, C, 1, out_dim)


# ---------------------------------------------------------------------- reference
def _reference(x, w1, b1, w2, b2):
    """Pure-JAX replica of the exact PyTorch forward semantics."""
    xf = x.astype(jnp.float32)
    pooled = xf.mean(axis=(2, 3), keepdims=True)                  # (B, C, 1, 1)

    def fc(p):
        h = jnp.maximum(p @ w1 + b1, 0.0)
        return jnp.maximum(h @ w2 + b2, 0.0)

    return jax.nn.sigmoid(fc(pooled) + fc(pooled))                # avg + "max" branch


if __name__ == "__main__":
    key = jax.random.PRNGKey(0)
    k1, k2, k3, k4, k5, k6 = jax.random.split(key, 6)

    B, C, H, W = 2, 4, 16, 16
    input_dim, output_dim, r = 1, 32, 16
    hidden = output_dim // r                                       # = 2

    w1 = jax.random.uniform(k2, (input_dim, hidden), jnp.float32, -1.0, 1.0)
    b1 = jax.random.uniform(k3, (hidden,), jnp.float32, -1.0, 1.0)
    w2 = jax.random.uniform(k4, (hidden, output_dim), jnp.float32, -0.7, 0.7)
    b2 = jax.random.uniform(k5, (output_dim,), jnp.float32, -0.7, 0.7)

    # 1) Primary case: f32, whole-row (single spatial chunk) path.
    x = jax.random.normal(k1, (B, C, H, W), jnp.float32)
    out = jax.block_until_ready(channel_attention(x, w1, b1, w2, b2))
    ref = _reference(x, w1, b1, w2, b2)
    assert out.shape == (B, C, 1, output_dim), out.shape
    assert jnp.allclose(out, ref, atol=1e-5, rtol=1e-5)

    # 2) Spatial-chunked accumulator path with a ragged tail (hw=200, chunk=128).
    xr = jax.random.normal(k6, (B, C, 10, 20), jnp.float32)
    out_r = jax.block_until_ready(
        channel_attention(xr, w1, b1, w2, b2, spatial_tile=128))
    ref_r = _reference(xr, w1, b1, w2, b2)
    assert out_r.shape == (B, C, 1, output_dim), out_r.shape
    assert jnp.allclose(out_r, ref_r, atol=1e-5, rtol=1e-5)

    # 3) bf16 input streams in its native dtype; accumulation is f32 in-kernel.
    xb = x.astype(jnp.bfloat16)
    out_b = jax.block_until_ready(channel_attention(xb, w1, b1, w2, b2))
    ref_b = _reference(xb, w1, b1, w2, b2)
    assert out_b.dtype == jnp.bfloat16
    assert jnp.allclose(out_b.astype(jnp.float32), ref_b, atol=1e-2, rtol=1e-2)

    print("KERNEL_OK")
</pallas_src>

<mosaic_0001>
module attributes {stable_mosaic.version = 11 : i64} {
  func.func @kernel(%arg0: i32, %arg1: memref<8x256xf32, #tpu.memory_space<vmem>>, %arg2: memref<1x2xf32, #tpu.memory_space<vmem>>, %arg3: memref<1x2xf32, #tpu.memory_space<vmem>>, %arg4: memref<2x32xf32, #tpu.memory_space<vmem>>, %arg5: memref<1x32xf32, #tpu.memory_space<vmem>>, %arg6: memref<8x32xf32, #tpu.memory_space<vmem>>) attributes {dimension_semantics = [#tpu.dimension_semantics<parallel>], iteration_bounds = array<i64: 1>, scalar_prefetch = 0 : i64, scratch_operands = 0 : i64, tpu.core_type = #tpu.core_type<tc>, window_params = [{transform_indices = @transform_0, window_bounds = array<i64: 8, 256>}, {pipeline_mode = #tpu.pipeline_mode<synchronous>, transform_indices = @transform_1, window_bounds = array<i64: 1, 2>}, {pipeline_mode = #tpu.pipeline_mode<synchronous>, transform_indices = @transform_2, window_bounds = array<i64: 1, 2>}, {pipeline_mode = #tpu.pipeline_mode<synchronous>, transform_indices = @transform_3, window_bounds = array<i64: 2, 32>}, {pipeline_mode = #tpu.pipeline_mode<synchronous>, transform_indices = @transform_4, window_bounds = array<i64: 1, 32>}, {transform_indices = @transform_5, window_bounds = array<i64: 8, 32>}]} {
    %c0 = arith.constant 0 : index
    %c0_0 = arith.constant 0 : index
    %0 = vector.load %arg1[%c0, %c0_0] : memref<8x256xf32, #tpu.memory_space<vmem>>, vector<8x256xf32>
    %cst = arith.constant dense<0.000000e+00> : vector<8xf32>
    %1 = vector.multi_reduction <add>, %0, %cst [1] : vector<8x256xf32> to vector<8xf32>
    %2 = vector.shape_cast %1 : vector<8xf32> to vector<8x1xf32>
    %cst_1 = arith.constant 3.906250e-03 : f32
    %3 = vector.broadcast %cst_1 : f32 to vector<8x1xf32>
    %4 = arith.mulf %2, %3 : vector<8x1xf32>
    %c0_2 = arith.constant 0 : index
    %c0_3 = arith.constant 0 : index
    %5 = vector.load %arg2[%c0_2, %c0_3] : memref<1x2xf32, #tpu.memory_space<vmem>>, vector<1x2xf32>
    %c0_4 = arith.constant 0 : index
    %c0_5 = arith.constant 0 : index
    %6 = vector.load %arg3[%c0_4, %c0_5] : memref<1x2xf32, #tpu.memory_space<vmem>>, vector<1x2xf32>
    %c0_6 = arith.constant 0 : index
    %c0_7 = arith.constant 0 : index
    %7 = vector.load %arg4[%c0_6, %c0_7] : memref<2x32xf32, #tpu.memory_space<vmem>>, vector<2x32xf32>
    %c0_8 = arith.constant 0 : index
    %c0_9 = arith.constant 0 : index
    %8 = vector.load %arg5[%c0_8, %c0_9] : memref<1x32xf32, #tpu.memory_space<vmem>>, vector<1x32xf32>
    %9 = vector.broadcast %4 : vector<8x1xf32> to vector<8x2xf32>
    %10 = vector.broadcast %5 : vector<1x2xf32> to vector<8x2xf32>
    %11 = arith.mulf %9, %10 : vector<8x2xf32>
    %12 = vector.broadcast %6 : vector<1x2xf32> to vector<8x2xf32>
    %13 = arith.addf %11, %12 : vector<8x2xf32>
    %cst_10 = arith.constant 0.000000e+00 : f32
    %14 = vector.broadcast %cst_10 : f32 to vector<8x2xf32>
    %15 = arith.maximumf %13, %14 : vector<8x2xf32>
    %cst_11 = arith.constant 0.000000e+00 : f32
    %16 = vector.broadcast %cst_11 : f32 to vector<8x32xf32>
    %17 = vector.extract_strided_slice %15 {offsets = [0, 0], sizes = [8, 1], strides = [1, 1]} : vector<8x2xf32> to vector<8x1xf32>
    %18 = vector.extract_strided_slice %7 {offsets = [0, 0], sizes = [1, 32], strides = [1, 1]} : vector<2x32xf32> to vector<1x32xf32>
    %19 = vector.broadcast %17 : vector<8x1xf32> to vector<8x32xf32>
    %20 = vector.broadcast %18 : vector<1x32xf32> to vector<8x32xf32>
    %21 = arith.mulf %19, %20 : vector<8x32xf32>
    %22 = arith.addf %16, %21 : vector<8x32xf32>
    %23 = vector.extract_strided_slice %15 {offsets = [0, 1], sizes = [8, 1], strides = [1, 1]} : vector<8x2xf32> to vector<8x1xf32>
    %24 = vector.extract_strided_slice %7 {offsets = [1, 0], sizes = [1, 32], strides = [1, 1]} : vector<2x32xf32> to vector<1x32xf32>
    %25 = vector.broadcast %23 : vector<8x1xf32> to vector<8x32xf32>
    %26 = vector.broadcast %24 : vector<1x32xf32> to vector<8x32xf32>
    %27 = arith.mulf %25, %26 : vector<8x32xf32>
    %28 = arith.addf %22, %27 : vector<8x32xf32>
    %29 = vector.broadcast %8 : vector<1x32xf32> to vector<8x32xf32>
    %30 = arith.addf %28, %29 : vector<8x32xf32>
    %cst_12 = arith.constant 0.000000e+00 : f32
    %31 = vector.broadcast %cst_12 : f32 to vector<8x32xf32>
    %32 = arith.maximumf %30, %31 : vector<8x32xf32>
    %cst_13 = arith.constant 2.000000e+00 : f32
    %33 = vector.broadcast %cst_13 : f32 to vector<8x32xf32>
    %34 = arith.mulf %33, %32 : vector<8x32xf32>
    %35 = arith.negf %34 : vector<8x32xf32>
    %36 = math.exp %35 : vector<8x32xf32>
    %cst_14 = arith.constant 1.000000e+00 : f32
    %37 = vector.broadcast %cst_14 : f32 to vector<8x32xf32>
    %38 = arith.addf %37, %36 : vector<8x32xf32>
    %39 = arith.divf %37, %38 : vector<8x32xf32>
    %c0_15 = arith.constant 0 : index
    %c0_16 = arith.constant 0 : index
    %40 = vector.load %arg6[%c0_15, %c0_16] : memref<8x32xf32, #tpu.memory_space<vmem>>, vector<8x32xf32>
    tpu.vector_store %arg6[%c0_15, %c0_16], %39 {strides = array<i32>} : memref<8x32xf32, #tpu.memory_space<vmem>>, vector<8x32xf32>,
    return
  }
  func.func @transform_0(%arg0: i32) -> (i32, i32) {
    %c0_i32 = arith.constant 0 : i32
    %c0_i32_0 = arith.constant 0 : i32
    return %arg0, %c0_i32 : i32, i32
  }
  func.func @transform_1(%arg0: i32) -> (i32, i32) {
    %c0_i32 = arith.constant 0 : i32
    %c0_i32_0 = arith.constant 0 : i32
    %c0_i32_1 = arith.constant 0 : i32
    return %c0_i32, %c0_i32_0 : i32, i32
  }
  func.func @transform_2(%arg0: i32) -> (i32, i32) {
    %c0_i32 = arith.constant 0 : i32
    %c0_i32_0 = arith.constant 0 : i32
    %c0_i32_1 = arith.constant 0 : i32
    return %c0_i32, %c0_i32_0 : i32, i32
  }
  func.func @transform_3(%arg0: i32) -> (i32, i32) {
    %c0_i32 = arith.constant 0 : i32
    %c0_i32_0 = arith.constant 0 : i32
    %c0_i32_1 = arith.constant 0 : i32
    return %c0_i32, %c0_i32_0 : i32, i32
  }
  func.func @transform_4(%arg0: i32) -> (i32, i32) {
    %c0_i32 = arith.constant 0 : i32
    %c0_i32_0 = arith.constant 0 : i32
    %c0_i32_1 = arith.constant 0 : i32
    return %c0_i32, %c0_i32_0 : i32, i32
  }
  func.func @transform_5(%arg0: i32) -> (i32, i32) {
    %c0_i32 = arith.constant 0 : i32
    %c0_i32_0 = arith.constant 0 : i32
    return %arg0, %c0_i32 : i32, i32
  }
}

</mosaic_0001>

<llo_original>
// kernel: tpu_custom_call.1
$region0: #{tpu_custom_call.1}
  #allocation0 [shape = 'u32[]', space=smem, size = 0x4, offset = 0x4, fixed_abs, tag = 'smem constant byte address 0x4 - core index']
  #allocation1 [shape = 'u32[144,128]{1,0:T(1,128)}', space=vmem, size = 0x12000, scoped, tag = 'internal scratch']
  %s0 = inlined_call_operand.hbm [shape: f32[8,256], index: 0, kind: input, shape index: {}]
  %s1 = inlined_call_operand.vmem [shape: f32[1,2], index: 1, kind: input, shape index: {}]
  %s2 = inlined_call_operand.hbm [shape: f32[1,2], index: 2, kind: input, shape index: {}]
  %s3 = inlined_call_operand.vmem [shape: f32[2,32], index: 3, kind: input, shape index: {}]
  %s4 = inlined_call_operand.vmem [shape: f32[1,32], index: 4, kind: input, shape index: {}]
  %s5 = inlined_call_operand.hbm [shape: f32[8,32], index: 5, kind: output, shape index: {}]
  %s6 = sld [smem:[#allocation0]]
  $region38: #{tpu_custom_call.1} parent=0
    _
  %s8 = ssub.s32 1, %s6
  %s9 = scalar_select 0, %s8, %s6
  $region1: #{tpu_custom_call.1} parent=0
    #allocation2 [shape = 'u8[8192]{0}', space=vmem, size = 0x2000, scoped, tag = 'input window, operand 0, single buffered']
    #allocation3 [shape = 's32[1]{0}', space=sflag, size = 0x4, scoped, tag = 'scoped memory for tpu_custom_call.1']
    #allocation4 [shape = 's32[1]{0}', space=sflag, size = 0x4, scoped, tag = 'scoped memory for tpu_custom_call.1']
    #allocation5 [shape = 'u8[512]{0}', space=vmem, size = 0x400, scoped, tag = 'input window, operand 2, single buffered']
    #allocation6 [shape = 's32[1]{0}', space=sflag, size = 0x4, scoped, tag = 'scoped memory for tpu_custom_call.1']
    #allocation7 [shape = 'u8[4096]{0}', space=vmem, size = 0x1000, scoped, tag = 'output window, operand 0, single buffered']
    %10 = vsyncpa [#allocation3], 0
    %11 = vsyncpa [#allocation6], 0
    %12 = vsyncpa [#allocation4], 0
    // Predicated region
    $region2: #{tpu_custom_call.1} parent=1 // pred_check
      _
    $region3: #{tpu_custom_call.1} parent=1 // pred_check_branch
      %14 = sbr.rel (0) target = $region5
    $region4: #{tpu_custom_call.1} parent=1 // pred_region
      %s16 = ssub.s32 256, 256
      %17 = vsyncadd [#allocation3], %s16
      %s19 = sshll.u32 [#allocation2], 4
      %s20 = int_to_ptr.vmem [resolvable:$true] %s19
      %22 = dma.hbm_to_vmem [thread:$0]  %s0, 256, %s20, [#allocation3]
    $region5: #{tpu_custom_call.1} parent=1 // pred_fallthru
      _
    // Predicated region
    $region6: #{tpu_custom_call.1} parent=1 // pred_check
      _
    $region7: #{tpu_custom_call.1} parent=1 // pred_check_branch
      %24 = sbr.rel (0) target = $region9
    $region8: #{tpu_custom_call.1} parent=1 // pred_region
      _
    $region9: #{tpu_custom_call.1} parent=1 // pred_fallthru
      _
    // Predicated region
    $region10: #{tpu_custom_call.1} parent=1 // pred_check
      _
    $region11: #{tpu_custom_call.1} parent=1 // pred_check_branch
      %26 = sbr.rel (0) target = $region13
    $region12: #{tpu_custom_call.1} parent=1 // pred_region
      %s28 = ssub.s32 16, 16
      %29 = vsyncadd [#allocation6], %s28
      %s31 = sshll.u32 [#allocation5], 4
      %s32 = int_to_ptr.vmem [resolvable:$true] %s31
      %34 = dma.hbm_to_vmem [thread:$0]  %s2, 16, %s32, [#allocation6]
    $region13: #{tpu_custom_call.1} parent=1 // pred_fallthru
      _
    // Predicated region
    $region14: #{tpu_custom_call.1} parent=1 // pred_check
      _
    $region15: #{tpu_custom_call.1} parent=1 // pred_check_branch
      %36 = sbr.rel (0) target = $region17
    $region16: #{tpu_custom_call.1} parent=1 // pred_region
      _
    $region17: #{tpu_custom_call.1} parent=1 // pred_fallthru
      _
    // Predicated region
    $region18: #{tpu_custom_call.1} parent=1 // pred_check
      _
    $region19: #{tpu_custom_call.1} parent=1 // pred_check_branch
      %38 = sbr.rel (0) target = $region21
    $region20: #{tpu_custom_call.1} parent=1 // pred_region
      _
    $region21: #{tpu_custom_call.1} parent=1 // pred_fallthru
      _
    // Predicated region
    $region22: #{tpu_custom_call.1} parent=1 // pred_check
      _
    $region23: #{tpu_custom_call.1} parent=1 // pred_check_branch
      %40 = sbr.rel (0) target = $region25
    $region24: #{tpu_custom_call.1} parent=1 // pred_region
      %41 = dma.done [#allocation3], 256
    $region25: #{tpu_custom_call.1} parent=1 // pred_fallthru
      _
    // Predicated region
    $region26: #{tpu_custom_call.1} parent=1 // pred_check
      _
    $region27: #{tpu_custom_call.1} parent=1 // pred_check_branch
      %43 = sbr.rel (0) target = $region29
    $region28: #{tpu_custom_call.1} parent=1 // pred_region
      %44 = dma.done [#allocation6], 16
    $region29: #{tpu_custom_call.1} parent=1 // pred_fallthru
      _
    %v45 = vld [vmem:[#allocation2] sm:$0xff]
    %v46 = vld [vmem:[#allocation2 + $0x8] sm:$0xff]
    %v47 = vadd.f32 %v45, %v46
    %48 = vadd.xlane.f32.xlu0 %v47
    %v49 = vpop.xlane.xlu0 %48
    %v50 = vmul.f32 %v49, 0.00390625
    %v51 = vld [vmem:[%s1] sm:$0x1]
    %v52 = vld [vmem:[#allocation5] sm:$0x1]
    %v53 = vld [vmem:[%s3] sm:$0x3]
    %v54 = vld [vmem:[%s4] sm:$0x1]
    %v56 = vlaneseq
    %v57 = vshrl.u32 %v56, 7
    %v58 = vsub.s32 0, %v57
    %v59 = vrot.slane %v51, %v58
    %v61 = vmul.f32 %v50, %v59
    %v63 = vlaneseq
    %v64 = vshrl.u32 %v63, 7
    %v65 = vsub.s32 0, %v64
    %v66 = vrot.slane %v52, %v65
    %v68 = vadd.f32 %v61, %v66
    %v69 = vmax.f32 %v68, 0.0
    %71 = vset.pattern.permute.xlu0 0
    %72 = vperm.xlu0 %71, %v69
    %v73 = vpop.permute.xlu0 %72
    %v75 = vlaneseq
    %v76 = vshrl.u32 %v75, 7
    %v77 = vsub.s32 0, %v76
    %v78 = vrot.slane %v53, %v77
    %v79 = vmul.f32 %v73, %v78
    %v80 = vadd.f32 %v79, 0.0
    %81 = vset.pattern.permute.xlu0 1
    %82 = vperm.xlu0 %81, %v69
    %v83 = vpop.permute.xlu0 %82
    %v85 = vlaneseq
    %v86 = vshrl.u32 %v85, 7
    %v87 = vsub.s32 1, %v86
    %v88 = vrot.slane %v53, %v87
    %v89 = vmul.f32 %v83, %v88
    %v90 = vadd.f32 %v80, %v89
    %v92 = vlaneseq
    %v93 = vshrl.u32 %v92, 7
    %v94 = vsub.s32 0, %v93
    %v95 = vrot.slane %v54, %v94
    %v97 = vadd.f32 %v90, %v95
    %v98 = vmax.f32 %v97, 0.0
    %v99 = vmul.f32 %v98, 2.0
    %v100 = vxor.u32 %v99, 2147483648
    %v101 = vmul.f32 %v100, 1.442695
    %v102 = vpow.pop %v101
    %v103 = vadd.f32 %v102, 1.0
    %v104 = vrcp.pop %v103
    %v105 = vmul.f32 1.0, %v104
    %vm106 = vcmask 261120
    %107 = vst.msk [vmem:[#allocation7] sm:$0xff] %vm106, %v105
    // Predicated region
    $region30: #{tpu_custom_call.1} parent=1 // pred_check
      _
    $region31: #{tpu_custom_call.1} parent=1 // pred_check_branch
      %109 = sbr.rel (0) target = $region33
    $region32: #{tpu_custom_call.1} parent=1 // pred_region
      %s111 = ssub.s32 128, 128
      %112 = vsyncadd [#allocation4], %s111
      %s114 = sshll.u32 [#allocation7], 4
      %s115 = int_to_ptr.vmem [resolvable:$true] %s114
      %117 = dma.vmem_to_hbm [thread:$0]  %s115, 128, %s5, [#allocation4]
    $region33: #{tpu_custom_call.1} parent=1 // pred_fallthru
      _
    // Predicated region
    $region34: #{tpu_custom_call.1} parent=1 // pred_check
      _
    $region35: #{tpu_custom_call.1} parent=1 // pred_check_branch
      %119 = sbr.rel (0) target = $region37
    $region36: #{tpu_custom_call.1} parent=1 // pred_region
      %120 = dma.done [#allocation4], 128
    $region37: #{tpu_custom_call.1} parent=1 // pred_fallthru
      _
    %121 = vsyncpa [#allocation3], 1
    %122 = vsyncpa [#allocation6], 1
    %123 = vsyncpa [#allocation4], 1

</llo_original>
